<compile_context>
chip_gen: v6e
topology: v6e:2x2x1
jax: 0.10.0
libtpu: 0.0.40
codegen_flags: <defaults>
</compile_context>

<pallas_src>
import math
import jax
import jax.numpy as jnp
from jax import lax
from jax.experimental import pallas as pl
from jax.experimental.pallas import tpu as pltpu


def _round_up(x, m):
    return ((x + m - 1) // m) * m


def _pick_batch_block(N, Cin_p, Cout, Lp, HWp, K9, budget_bytes=12 << 20):
    """Largest batch block per grid step whose VMEM working set stays under budget.

    Budget is conservative (~12 MiB) so the kernel fits v5e's scoped VMEM and leaves
    plenty of headroom on v7x (64 MiB physical).
    """
    def step_bytes(nb):
        col = K9 * nb * HWp * 4                      # im2col scratch (single-buffered)
        xin = 2 * nb * Cin_p * Lp * 4                # double-buffered input block
        out = 2 * nb * Cout * HWp * 4                # double-buffered output block
        wgt = 2 * Cout * _round_up(K9, 128) * 4      # folded weights (lane-padded)
        par = 2 * (Cout + nb * Cout) * 128 * 4       # tiny packed params (sublane/lane pad)
        return col + xin + out + wgt + par

    nb = 1
    for cand in range(1, N + 1):
        if step_bytes(cand) <= budget_bytes:
            nb = cand
    return nb


def _make_block_kernel(Nb, Cin_p, Cout, W, HWp, K9, has_mod):
    inv_sqrt2 = 1.0 / math.sqrt(2.0)

    def kernel(*refs):
        if has_mod:
            x_ref, w_ref, bg_ref, ssh_ref, o_ref, col_ref = refs
        else:
            x_ref, w_ref, bg_ref, o_ref, col_ref = refs
            ssh_ref = None

        # Width-edge masks built in-kernel (saves a pipelined (2,HW) input + its DMA).
        wpos = lax.broadcasted_iota(jnp.int32, (1, HWp), 1) % W
        mask_l = jnp.broadcast_to((wpos != 0).astype(jnp.float32), (Cin_p, HWp))      # w==0
        mask_r = jnp.broadcast_to((wpos != W - 1).astype(jnp.float32), (Cin_p, HWp))  # w==W-1

        # im2col: Nb batch segments side by side on the lane axis.  For each of the 3
        # kernel rows, load the centre (kw=1) tap once and derive the kw=0 / kw=2 taps
        # with pltpu.roll (XLU slot) instead of two extra unaligned lane slices.
        for nb in range(Nb):
            xp = x_ref[nb]                                             # (Cin_p, Lp)
            c0 = nb * HWp
            for kh in range(3):
                s = kh * W + 1                                         # centre-tap offset
                base = xp[:, s:s + HWp]                                # (Cin_p, HWp)
                left = pltpu.roll(base, shift=1, axis=1) * mask_l      # kw=0 tap
                right = pltpu.roll(base, shift=HWp - 1, axis=1) * mask_r  # kw=2 tap
                r0 = (kh * 3) * Cin_p
                col_ref[r0:r0 + Cin_p, c0:c0 + HWp] = left
                col_ref[r0 + Cin_p:r0 + 2 * Cin_p, c0:c0 + HWp] = base
                col_ref[r0 + 2 * Cin_p:r0 + 3 * Cin_p, c0:c0 + HWp] = right

        # 3x3 conv folded into ONE MXU matmul: (Cout, 9*Cin_p) @ (9*Cin_p, Nb*HWp).
        acc = jnp.dot(w_ref[...], col_ref[...], preferred_element_type=jnp.float32)
        acc = acc + bg_ref[:, 0:1]                                     # conv bias

        # RMSNorm over channels (sublane axis); rsqrt rides the EUP slot.
        ss = jnp.sum(acc * acc, axis=0, keepdims=True)                 # (1, Nb*HWp)
        y = acc * lax.rsqrt(jnp.maximum(ss, 1e-24)) * bg_ref[:, 1:2]   # gain * sqrt(dim)

        # Per-batch modulation + exact (erf) GELU; lane-dense stores per segment.
        for nb in range(Nb):
            seg = y[:, nb * HWp:(nb + 1) * HWp]
            if has_mod:
                seg = seg * (ssh_ref[nb, :, 0:1] + 1.0) + ssh_ref[nb, :, 1:2]
            seg = 0.5 * seg * (1.0 + lax.erf(seg * inv_sqrt2))
            o_ref[nb] = seg.astype(o_ref.dtype)

    return kernel


def block_forward(x_nchw, w_oihw, b, g, scale=None, shift=None):
    """Forward pass of `Block`. x_nchw: (N, Cin, H, W) float32 -> (N, Cout, H, W)."""
    N, Cin, H, W = x_nchw.shape
    Cout = w_oihw.shape[0]
    HW = H * W
    HWp = _round_up(HW, 128)                   # lane-dense output stores
    Cin_p = _round_up(Cin, 8)                  # channels on sublanes
    K9 = 9 * Cin_p                             # contraction size of the folded conv matmul
    Lraw = (H + 2) * W + 2                     # height halo + 1 guard column each end
    Lp = _round_up(max(Lraw, 2 * W + 1 + HWp), 128)   # lane-aligned flat input length

    has_mod = scale is not None

    Nb = _pick_batch_block(N, Cin_p, Cout, Lp, HWp, K9)
    grid_n = -(-N // Nb)
    Np = grid_n * Nb

    # ---- wrapper-side prep (no NCHW<->NHWC transposes; NCHW is already channel-major) ----
    x = x_nchw.astype(jnp.float32)
    x = jnp.pad(x, ((0, Np - N), (0, Cin_p - Cin), (1, 1), (0, 0)))    # batch/chan/height pad
    x = x.reshape(Np, Cin_p, (H + 2) * W)
    x = jnp.pad(x, ((0, 0), (0, 0), (1, Lp - (H + 2) * W - 1)))        # guard + lane pad -> Lp

    # conv weights: OIHW -> (Cout, 9*Cin_p), tap-major (kh, kw) then channel
    w = jnp.transpose(w_oihw.astype(jnp.float32), (0, 2, 3, 1))        # (Cout, 3, 3, Cin)
    w = jnp.pad(w, ((0, 0), (0, 0), (0, 0), (0, Cin_p - Cin)))
    w = w.reshape(Cout, K9)

    # packed tiny params: column 0 = conv bias, column 1 = RMSNorm gain * sqrt(dim)
    bg = jnp.stack(
        [b.reshape(-1).astype(jnp.float32),
         g.reshape(-1).astype(jnp.float32) * (Cout ** 0.5)], axis=1)   # (Cout, 2)

    in_specs = [
        pl.BlockSpec((Nb, Cin_p, Lp), lambda n: (n, 0, 0)),   # flattened, padded input
        pl.BlockSpec((Cout, K9), lambda n: (0, 0)),           # folded conv weights
        pl.BlockSpec((Cout, 2), lambda n: (0, 0)),            # packed (bias, gain)
    ]
    args = [x, w, bg]

    if has_mod:
        ssh = jnp.stack(
            [scale.reshape(N, Cout).astype(jnp.float32),
             shift.reshape(N, Cout).astype(jnp.float32)], axis=-1)    # (N, Cout, 2)
        ssh = jnp.pad(ssh, ((0, Np - N), (0, 0), (0, 0)))
        in_specs.append(pl.BlockSpec((Nb, Cout, 2), lambda n: (n, 0, 0)))
        args.append(ssh)

    kernel = _make_block_kernel(Nb, Cin_p, Cout, W, HWp, K9, has_mod)

    out = pl.pallas_call(
        kernel,
        out_shape=jax.ShapeDtypeStruct((Np, Cout, HWp), jnp.float32),
        grid_spec=pltpu.PrefetchScalarGridSpec(
            num_scalar_prefetch=0,
            grid=(grid_n,),
            in_specs=in_specs,
            out_specs=pl.BlockSpec((Nb, Cout, HWp), lambda n: (n, 0, 0)),
            scratch_shapes=[pltpu.VMEM((K9, Nb * HWp), jnp.float32)],  # fused im2col tile
        ),
        compiler_params=pltpu.CompilerParams(
            dimension_semantics=("parallel",),
            vmem_limit_bytes=32 * 1024 * 1024),
    )(*args)

    return out[:N, :, :HW].reshape(N, Cout, H, W)


def block_reference(x_nchw, w_oihw, b, g, scale=None, shift=None):
    """Pure-JAX reference (mirrors the PyTorch module) for validation."""
    Cout = w_oihw.shape[0]
    y = lax.conv_general_dilated(
        x_nchw, w_oihw, window_strides=(1, 1), padding=((1, 1), (1, 1)),
        dimension_numbers=("NCHW", "OIHW", "NCHW"))
    y = y + b.reshape(1, Cout, 1, 1)
    nrm = jnp.sqrt(jnp.sum(y * y, axis=1, keepdims=True))
    y = y / jnp.maximum(nrm, 1e-12) * g.reshape(1, Cout, 1, 1) * (Cout ** 0.5)
    if scale is not None:
        y = y * (scale.reshape(-1, Cout, 1, 1) + 1.0) + shift.reshape(-1, Cout, 1, 1)
    return 0.5 * y * (1.0 + lax.erf(y / math.sqrt(2.0)))


if __name__ == "__main__":
    N, Cin, Cout, H, W = 2, 4, 8, 16, 16

    key = jax.random.PRNGKey(0)
    kx, kw, kb, ks, ksh = jax.random.split(key, 5)

    x = jax.random.normal(kx, (N, Cin, H, W), jnp.float32)
    fan_in = Cin * 9
    bound = 1.0 / math.sqrt(fan_in)
    w = jax.random.uniform(kw, (Cout, Cin, 3, 3), jnp.float32, -bound, bound)
    b = jax.random.uniform(kb, (Cout,), jnp.float32, -bound, bound)
    g = jnp.ones((Cout,), jnp.float32)   # RMSNorm gain init (torch.ones(1, dim, 1, 1))
    scale = 0.1 * jax.random.normal(ks, (N, Cout), jnp.float32)
    shift = 0.1 * jax.random.normal(ksh, (N, Cout), jnp.float32)

    # with (scale, shift) modulation
    out = jax.block_until_ready(block_forward(x, w, b, g, scale, shift))
    ref = block_reference(x, w, b, g, scale, shift)
    assert out.shape == (N, Cout, H, W)
    err = float(jnp.max(jnp.abs(out - ref)))
    assert jnp.allclose(out, ref, atol=1e-4, rtol=1e-4), err

    # scale_shift=None path (specialized kernel: no modulation inputs at all)
    out_none = jax.block_until_ready(block_forward(x, w, b, g))
    ref_none = block_reference(x, w, b, g)
    err_none = float(jnp.max(jnp.abs(out_none - ref_none)))
    assert jnp.allclose(out_none, ref_none, atol=1e-4, rtol=1e-4), err_none

    print("KERNEL_OK")
</pallas_src>

<mosaic_0001>
module attributes {stable_mosaic.version = 11 : i64} {
  func.func @kernel(%arg0: i32, %arg1: memref<2x8x384xf32, #tpu.memory_space<vmem>>, %arg2: memref<8x72xf32, #tpu.memory_space<vmem>>, %arg3: memref<8x2xf32, #tpu.memory_space<vmem>>, %arg4: memref<2x8x2xf32, #tpu.memory_space<vmem>>, %arg5: memref<2x8x256xf32, #tpu.memory_space<vmem>>, %arg6: memref<72x512xf32, #tpu.memory_space<vmem>>) attributes {dimension_semantics = [#tpu.dimension_semantics<parallel>], iteration_bounds = array<i64: 1>, scalar_prefetch = 0 : i64, scratch_operands = 1 : i64, tpu.core_type = #tpu.core_type<tc>, window_params = [{transform_indices = @transform_0, window_bounds = array<i64: 2, 8, 384>}, {pipeline_mode = #tpu.pipeline_mode<synchronous>, transform_indices = @transform_1, window_bounds = array<i64: 8, 72>}, {pipeline_mode = #tpu.pipeline_mode<synchronous>, transform_indices = @transform_2, window_bounds = array<i64: 8, 2>}, {transform_indices = @transform_3, window_bounds = array<i64: 2, 8, 2>}, {transform_indices = @transform_4, window_bounds = array<i64: 2, 8, 256>}]} {
    %0 = tpu.iota {dimensions = array<i32: 1>} : vector<1x256xi32>
    %c16_i32 = arith.constant 16 : i32
    %c0_i32 = arith.constant 0 : i32
    %1 = arith.cmpi eq, %c16_i32, %c0_i32 : i32
    %c1_i32 = arith.constant 1 : i32
    %2 = arith.select %1, %c1_i32, %c16_i32 : i32
    %3 = vector.broadcast %2 : i32 to vector<1x256xi32>
    %4 = arith.remsi %0, %3 : vector<1x256xi32>
    %c0_i32_0 = arith.constant 0 : i32
    %5 = vector.broadcast %c0_i32_0 : i32 to vector<1x256xi32>
    %6 = arith.cmpi ne, %4, %5 : vector<1x256xi32>
    %c0_i32_1 = arith.constant 0 : i32
    %7 = vector.broadcast %c0_i32_1 : i32 to vector<1x256xi32>
    %8 = arith.cmpi slt, %4, %7 : vector<1x256xi32>
    %c0_i32_2 = arith.constant 0 : i32
    %9 = arith.cmpi slt, %2, %c0_i32_2 : i32
    %10 = vector.broadcast %9 : i1 to vector<1x256xi1>
    %11 = vector.broadcast %10 : vector<1x256xi1> to vector<1x256xi1>
    %12 = arith.xori %8, %11 : vector<1x256xi1>
    %13 = arith.andi %12, %6 : vector<1x256xi1>
    %14 = vector.broadcast %2 : i32 to vector<1x256xi32>
    %15 = arith.addi %4, %14 : vector<1x256xi32>
    %16 = arith.select %13, %15, %4 : vector<1x256xi1>, vector<1x256xi32>
    %c0_i32_3 = arith.constant 0 : i32
    %17 = vector.broadcast %c0_i32_3 : i32 to vector<1x256xi32>
    %18 = arith.cmpi ne, %16, %17 : vector<1x256xi32>
    %19 = arith.extui %18 : vector<1x256xi1> to vector<1x256xi32>
    %20 = arith.sitofp %19 : vector<1x256xi32> to vector<1x256xf32>
    %21 = vector.shape_cast %20 : vector<1x256xf32> to vector<1x256xf32>
    %22 = vector.broadcast %21 : vector<1x256xf32> to vector<8x256xf32>
    %c15_i32 = arith.constant 15 : i32
    %23 = vector.broadcast %c15_i32 : i32 to vector<1x256xi32>
    %24 = arith.cmpi ne, %16, %23 : vector<1x256xi32>
    %25 = arith.extui %24 : vector<1x256xi1> to vector<1x256xi32>
    %26 = arith.sitofp %25 : vector<1x256xi32> to vector<1x256xf32>
    %27 = vector.shape_cast %26 : vector<1x256xf32> to vector<1x256xf32>
    %28 = vector.broadcast %27 : vector<1x256xf32> to vector<8x256xf32>
    %c0 = arith.constant 0 : index
    %c0_4 = arith.constant 0 : index
    %c0_5 = arith.constant 0 : index
    %29 = vector.load %arg1[%c0, %c0_4, %c0_5] : memref<2x8x384xf32, #tpu.memory_space<vmem>>, vector<1x8x384xf32>
    %30 = vector.shape_cast %29 : vector<1x8x384xf32> to vector<8x384xf32>
    %31 = vector.extract_strided_slice %30 {offsets = [0, 1], sizes = [8, 256], strides = [1, 1]} : vector<8x384xf32> to vector<8x256xf32>
    %c1_i32_6 = arith.constant 1 : i32
    %32 = tpu.dynamic_rotate %31 by %c1_i32_6 dim 1 : vector<8x256xf32>, i32 -> vector<8x256xf32>
    %33 = arith.mulf %32, %22 : vector<8x256xf32>
    %c255_i32 = arith.constant 255 : i32
    %34 = tpu.dynamic_rotate %31 by %c255_i32 dim 1 : vector<8x256xf32>, i32 -> vector<8x256xf32>
    %35 = arith.mulf %34, %28 : vector<8x256xf32>
    %c0_7 = arith.constant 0 : index
    %c0_8 = arith.constant 0 : index
    %36 = vector.load %arg6[%c0_7, %c0_8] : memref<72x512xf32, #tpu.memory_space<vmem>>, vector<8x256xf32>
    tpu.vector_store %arg6[%c0_7, %c0_8], %33 {strides = array<i32>} : memref<72x512xf32, #tpu.memory_space<vmem>>, vector<8x256xf32>,
    %c8 = arith.constant 8 : index
    %c0_9 = arith.constant 0 : index
    %37 = vector.load %arg6[%c8, %c0_9] : memref<72x512xf32, #tpu.memory_space<vmem>>, vector<8x256xf32>
    tpu.vector_store %arg6[%c8, %c0_9], %31 {strides = array<i32>} : memref<72x512xf32, #tpu.memory_space<vmem>>, vector<8x256xf32>,
    %c16 = arith.constant 16 : index
    %c0_10 = arith.constant 0 : index
    %38 = vector.load %arg6[%c16, %c0_10] : memref<72x512xf32, #tpu.memory_space<vmem>>, vector<8x256xf32>
    tpu.vector_store %arg6[%c16, %c0_10], %35 {strides = array<i32>} : memref<72x512xf32, #tpu.memory_space<vmem>>, vector<8x256xf32>,
    %39 = vector.extract_strided_slice %30 {offsets = [0, 17], sizes = [8, 256], strides = [1, 1]} : vector<8x384xf32> to vector<8x256xf32>
    %c1_i32_11 = arith.constant 1 : i32
    %40 = tpu.dynamic_rotate %39 by %c1_i32_11 dim 1 : vector<8x256xf32>, i32 -> vector<8x256xf32>
    %41 = arith.mulf %40, %22 : vector<8x256xf32>
    %c255_i32_12 = arith.constant 255 : i32
    %42 = tpu.dynamic_rotate %39 by %c255_i32_12 dim 1 : vector<8x256xf32>, i32 -> vector<8x256xf32>
    %43 = arith.mulf %42, %28 : vector<8x256xf32>
    %c24 = arith.constant 24 : index
    %c0_13 = arith.constant 0 : index
    %44 = vector.load %arg6[%c24, %c0_13] : memref<72x512xf32, #tpu.memory_space<vmem>>, vector<8x256xf32>
    tpu.vector_store %arg6[%c24, %c0_13], %41 {strides = array<i32>} : memref<72x512xf32, #tpu.memory_space<vmem>>, vector<8x256xf32>,
    %c32 = arith.constant 32 : index
    %c0_14 = arith.constant 0 : index
    %45 = vector.load %arg6[%c32, %c0_14] : memref<72x512xf32, #tpu.memory_space<vmem>>, vector<8x256xf32>
    tpu.vector_store %arg6[%c32, %c0_14], %39 {strides = array<i32>} : memref<72x512xf32, #tpu.memory_space<vmem>>, vector<8x256xf32>,
    %c40 = arith.constant 40 : index
    %c0_15 = arith.constant 0 : index
    %46 = vector.load %arg6[%c40, %c0_15] : memref<72x512xf32, #tpu.memory_space<vmem>>, vector<8x256xf32>
    tpu.vector_store %arg6[%c40, %c0_15], %43 {strides = array<i32>} : memref<72x512xf32, #tpu.memory_space<vmem>>, vector<8x256xf32>,
    %47 = vector.extract_strided_slice %30 {offsets = [0, 33], sizes = [8, 256], strides = [1, 1]} : vector<8x384xf32> to vector<8x256xf32>
    %c1_i32_16 = arith.constant 1 : i32
    %48 = tpu.dynamic_rotate %47 by %c1_i32_16 dim 1 : vector<8x256xf32>, i32 -> vector<8x256xf32>
    %49 = arith.mulf %48, %22 : vector<8x256xf32>
    %c255_i32_17 = arith.constant 255 : i32
    %50 = tpu.dynamic_rotate %47 by %c255_i32_17 dim 1 : vector<8x256xf32>, i32 -> vector<8x256xf32>
    %51 = arith.mulf %50, %28 : vector<8x256xf32>
    %c48 = arith.constant 48 : index
    %c0_18 = arith.constant 0 : index
    %52 = vector.load %arg6[%c48, %c0_18] : memref<72x512xf32, #tpu.memory_space<vmem>>, vector<8x256xf32>
    tpu.vector_store %arg6[%c48, %c0_18], %49 {strides = array<i32>} : memref<72x512xf32, #tpu.memory_space<vmem>>, vector<8x256xf32>,
    %c56 = arith.constant 56 : index
    %c0_19 = arith.constant 0 : index
    %53 = vector.load %arg6[%c56, %c0_19] : memref<72x512xf32, #tpu.memory_space<vmem>>, vector<8x256xf32>
    tpu.vector_store %arg6[%c56, %c0_19], %47 {strides = array<i32>} : memref<72x512xf32, #tpu.memory_space<vmem>>, vector<8x256xf32>,
    %c64 = arith.constant 64 : index
    %c0_20 = arith.constant 0 : index
    %54 = vector.load %arg6[%c64, %c0_20] : memref<72x512xf32, #tpu.memory_space<vmem>>, vector<8x256xf32>
    tpu.vector_store %arg6[%c64, %c0_20], %51 {strides = array<i32>} : memref<72x512xf32, #tpu.memory_space<vmem>>, vector<8x256xf32>,
    %c1 = arith.constant 1 : index
    %c0_21 = arith.constant 0 : index
    %c0_22 = arith.constant 0 : index
    %55 = vector.load %arg1[%c1, %c0_21, %c0_22] : memref<2x8x384xf32, #tpu.memory_space<vmem>>, vector<1x8x384xf32>
    %56 = vector.shape_cast %55 : vector<1x8x384xf32> to vector<8x384xf32>
    %57 = vector.extract_strided_slice %56 {offsets = [0, 1], sizes = [8, 256], strides = [1, 1]} : vector<8x384xf32> to vector<8x256xf32>
    %c1_i32_23 = arith.constant 1 : i32
    %58 = tpu.dynamic_rotate %57 by %c1_i32_23 dim 1 : vector<8x256xf32>, i32 -> vector<8x256xf32>
    %59 = arith.mulf %58, %22 : vector<8x256xf32>
    %c255_i32_24 = arith.constant 255 : i32
    %60 = tpu.dynamic_rotate %57 by %c255_i32_24 dim 1 : vector<8x256xf32>, i32 -> vector<8x256xf32>
    %61 = arith.mulf %60, %28 : vector<8x256xf32>
    %c0_25 = arith.constant 0 : index
    %c256 = arith.constant 256 : index
    %62 = vector.load %arg6[%c0_25, %c256] : memref<72x512xf32, #tpu.memory_space<vmem>>, vector<8x256xf32>
    tpu.vector_store %arg6[%c0_25, %c256], %59 {strides = array<i32>} : memref<72x512xf32, #tpu.memory_space<vmem>>, vector<8x256xf32>,
    %c8_26 = arith.constant 8 : index
    %c256_27 = arith.constant 256 : index
    %63 = vector.load %arg6[%c8_26, %c256_27] : memref<72x512xf32, #tpu.memory_space<vmem>>, vector<8x256xf32>
    tpu.vector_store %arg6[%c8_26, %c256_27], %57 {strides = array<i32>} : memref<72x512xf32, #tpu.memory_space<vmem>>, vector<8x256xf32>,
    %c16_28 = arith.constant 16 : index
    %c256_29 = arith.constant 256 : index
    %64 = vector.load %arg6[%c16_28, %c256_29] : memref<72x512xf32, #tpu.memory_space<vmem>>, vector<8x256xf32>
    tpu.vector_store %arg6[%c16_28, %c256_29], %61 {strides = array<i32>} : memref<72x512xf32, #tpu.memory_space<vmem>>, vector<8x256xf32>,
    %65 = vector.extract_strided_slice %56 {offsets = [0, 17], sizes = [8, 256], strides = [1, 1]} : vector<8x384xf32> to vector<8x256xf32>
    %c1_i32_30 = arith.constant 1 : i32
    %66 = tpu.dynamic_rotate %65 by %c1_i32_30 dim 1 : vector<8x256xf32>, i32 -> vector<8x256xf32>
    %67 = arith.mulf %66, %22 : vector<8x256xf32>
    %c255_i32_31 = arith.constant 255 : i32
    %68 = tpu.dynamic_rotate %65 by %c255_i32_31 dim 1 : vector<8x256xf32>, i32 -> vector<8x256xf32>
    %69 = arith.mulf %68, %28 : vector<8x256xf32>
    %c24_32 = arith.constant 24 : index
    %c256_33 = arith.constant 256 : index
    %70 = vector.load %arg6[%c24_32, %c256_33] : memref<72x512xf32, #tpu.memory_space<vmem>>, vector<8x256xf32>
    tpu.vector_store %arg6[%c24_32, %c256_33], %67 {strides = array<i32>} : memref<72x512xf32, #tpu.memory_space<vmem>>, vector<8x256xf32>,
    %c32_34 = arith.constant 32 : index
    %c256_35 = arith.constant 256 : index
    %71 = vector.load %arg6[%c32_34, %c256_35] : memref<72x512xf32, #tpu.memory_space<vmem>>, vector<8x256xf32>
    tpu.vector_store %arg6[%c32_34, %c256_35], %65 {strides = array<i32>} : memref<72x512xf32, #tpu.memory_space<vmem>>, vector<8x256xf32>,
    %c40_36 = arith.constant 40 : index
    %c256_37 = arith.constant 256 : index
    %72 = vector.load %arg6[%c40_36, %c256_37] : memref<72x512xf32, #tpu.memory_space<vmem>>, vector<8x256xf32>
    tpu.vector_store %arg6[%c40_36, %c256_37], %69 {strides = array<i32>} : memref<72x512xf32, #tpu.memory_space<vmem>>, vector<8x256xf32>,
    %73 = vector.extract_strided_slice %56 {offsets = [0, 33], sizes = [8, 256], strides = [1, 1]} : vector<8x384xf32> to vector<8x256xf32>
    %c1_i32_38 = arith.constant 1 : i32
    %74 = tpu.dynamic_rotate %73 by %c1_i32_38 dim 1 : vector<8x256xf32>, i32 -> vector<8x256xf32>
    %75 = arith.mulf %74, %22 : vector<8x256xf32>
    %c255_i32_39 = arith.constant 255 : i32
    %76 = tpu.dynamic_rotate %73 by %c255_i32_39 dim 1 : vector<8x256xf32>, i32 -> vector<8x256xf32>
    %77 = arith.mulf %76, %28 : vector<8x256xf32>
    %c48_40 = arith.constant 48 : index
    %c256_41 = arith.constant 256 : index
    %78 = vector.load %arg6[%c48_40, %c256_41] : memref<72x512xf32, #tpu.memory_space<vmem>>, vector<8x256xf32>
    tpu.vector_store %arg6[%c48_40, %c256_41], %75 {strides = array<i32>} : memref<72x512xf32, #tpu.memory_space<vmem>>, vector<8x256xf32>,
    %c56_42 = arith.constant 56 : index
    %c256_43 = arith.constant 256 : index
    %79 = vector.load %arg6[%c56_42, %c256_43] : memref<72x512xf32, #tpu.memory_space<vmem>>, vector<8x256xf32>
    tpu.vector_store %arg6[%c56_42, %c256_43], %73 {strides = array<i32>} : memref<72x512xf32, #tpu.memory_space<vmem>>, vector<8x256xf32>,
    %c64_44 = arith.constant 64 : index
    %c256_45 = arith.constant 256 : index
    %80 = vector.load %arg6[%c64_44, %c256_45] : memref<72x512xf32, #tpu.memory_space<vmem>>, vector<8x256xf32>
    tpu.vector_store %arg6[%c64_44, %c256_45], %77 {strides = array<i32>} : memref<72x512xf32, #tpu.memory_space<vmem>>, vector<8x256xf32>,
    %c0_46 = arith.constant 0 : index
    %c0_47 = arith.constant 0 : index
    %81 = vector.load %arg2[%c0_46, %c0_47] : memref<8x72xf32, #tpu.memory_space<vmem>>, vector<8x72xf32>
    %c0_48 = arith.constant 0 : index
    %c0_49 = arith.constant 0 : index
    %82 = vector.load %arg6[%c0_48, %c0_49] : memref<72x512xf32, #tpu.memory_space<vmem>>, vector<72x512xf32>
    %cst = arith.constant dense<0.000000e+00> : vector<8x512xf32>
    %83 = tpu.matmul %81, %82, %cst {dimension_numbers = #tpu.dot_dimension_numbers<[1], [0], [0], [1], [0, 0, 1, 1], [], []>} : vector<8x72xf32>, vector<72x512xf32>, vector<8x512xf32> -> vector<8x512xf32>
    %c0_50 = arith.constant 0 : index
    %c0_51 = arith.constant 0 : index
    %84 = vector.load %arg3[%c0_50, %c0_51] : memref<8x2xf32, #tpu.memory_space<vmem>>, vector<8x1xf32>
    %85 = vector.broadcast %84 : vector<8x1xf32> to vector<8x512xf32>
    %86 = arith.addf %83, %85 : vector<8x512xf32>
    %87 = arith.mulf %86, %86 : vector<8x512xf32>
    %cst_52 = arith.constant dense<0.000000e+00> : vector<512xf32>
    %88 = vector.multi_reduction <add>, %87, %cst_52 [0] : vector<8x512xf32> to vector<512xf32>
    %89 = vector.shape_cast %88 : vector<512xf32> to vector<1x512xf32>
    %cst_53 = arith.constant 1.000000e-24 : f32
    %90 = vector.broadcast %cst_53 : f32 to vector<1x512xf32>
    %91 = arith.maximumf %89, %90 : vector<1x512xf32>
    %92 = math.rsqrt %91 : vector<1x512xf32>
    %93 = vector.broadcast %92 : vector<1x512xf32> to vector<8x512xf32>
    %94 = arith.mulf %86, %93 : vector<8x512xf32>
    %c0_54 = arith.constant 0 : index
    %c1_55 = arith.constant 1 : index
    %95 = vector.load %arg3[%c0_54, %c1_55] : memref<8x2xf32, #tpu.memory_space<vmem>>, vector<8x1xf32>
    %96 = vector.broadcast %95 : vector<8x1xf32> to vector<8x512xf32>
    %97 = arith.mulf %94, %96 : vector<8x512xf32>
    %98 = vector.extract_strided_slice %97 {offsets = [0, 0], sizes = [8, 256], strides = [1, 1]} : vector<8x512xf32> to vector<8x256xf32>
    %c0_56 = arith.constant 0 : index
    %c0_57 = arith.constant 0 : index
    %c0_58 = arith.constant 0 : index
    %99 = vector.load %arg4[%c0_56, %c0_57, %c0_58] : memref<2x8x2xf32, #tpu.memory_space<vmem>>, vector<1x8x1xf32>
    %100 = vector.shape_cast %99 : vector<1x8x1xf32> to vector<8x1xf32>
    %cst_59 = arith.constant 1.000000e+00 : f32
    %101 = vector.broadcast %cst_59 : f32 to vector<8x1xf32>
    %102 = arith.addf %100, %101 : vector<8x1xf32>
    %103 = vector.broadcast %102 : vector<8x1xf32> to vector<8x256xf32>
    %104 = arith.mulf %98, %103 : vector<8x256xf32>
    %c0_60 = arith.constant 0 : index
    %c0_61 = arith.constant 0 : index
    %c1_62 = arith.constant 1 : index
    %105 = vector.load %arg4[%c0_60, %c0_61, %c1_62] : memref<2x8x2xf32, #tpu.memory_space<vmem>>, vector<1x8x1xf32>
    %106 = vector.shape_cast %105 : vector<1x8x1xf32> to vector<8x1xf32>
    %107 = vector.broadcast %106 : vector<8x1xf32> to vector<8x256xf32>
    %108 = arith.addf %104, %107 : vector<8x256xf32>
    %cst_63 = arith.constant 5.000000e-01 : f32
    %109 = vector.broadcast %cst_63 : f32 to vector<8x256xf32>
    %110 = arith.mulf %109, %108 : vector<8x256xf32>
    %cst_64 = arith.constant 0.707106769 : f32
    %111 = vector.broadcast %cst_64 : f32 to vector<8x256xf32>
    %112 = arith.mulf %108, %111 : vector<8x256xf32>
    %113 = math.erf %112 : vector<8x256xf32>
    %cst_65 = arith.constant 1.000000e+00 : f32
    %114 = vector.broadcast %cst_65 : f32 to vector<8x256xf32>
    %115 = arith.addf %114, %113 : vector<8x256xf32>
    %116 = arith.mulf %110, %115 : vector<8x256xf32>
    %c0_66 = arith.constant 0 : index
    %c0_67 = arith.constant 0 : index
    %c0_68 = arith.constant 0 : index
    %117 = vector.load %arg5[%c0_66, %c0_67, %c0_68] : memref<2x8x256xf32, #tpu.memory_space<vmem>>, vector<1x8x256xf32>
    %118 = vector.shape_cast %117 : vector<1x8x256xf32> to vector<8x256xf32>
    %119 = vector.shape_cast %116 : vector<8x256xf32> to vector<1x8x256xf32>
    tpu.vector_store %arg5[%c0_66, %c0_67, %c0_68], %119 {strides = array<i32>} : memref<2x8x256xf32, #tpu.memory_space<vmem>>, vector<1x8x256xf32>,
    %120 = vector.extract_strided_slice %97 {offsets = [0, 256], sizes = [8, 256], strides = [1, 1]} : vector<8x512xf32> to vector<8x256xf32>
    %c1_69 = arith.constant 1 : index
    %c0_70 = arith.constant 0 : index
    %c0_71 = arith.constant 0 : index
    %121 = vector.load %arg4[%c1_69, %c0_70, %c0_71] : memref<2x8x2xf32, #tpu.memory_space<vmem>>, vector<1x8x1xf32>
    %122 = vector.shape_cast %121 : vector<1x8x1xf32> to vector<8x1xf32>
    %cst_72 = arith.constant 1.000000e+00 : f32
    %123 = vector.broadcast %cst_72 : f32 to vector<8x1xf32>
    %124 = arith.addf %122, %123 : vector<8x1xf32>
    %125 = vector.broadcast %124 : vector<8x1xf32> to vector<8x256xf32>
    %126 = arith.mulf %120, %125 : vector<8x256xf32>
    %c1_73 = arith.constant 1 : index
    %c0_74 = arith.constant 0 : index
    %c1_75 = arith.constant 1 : index
    %127 = vector.load %arg4[%c1_73, %c0_74, %c1_75] : memref<2x8x2xf32, #tpu.memory_space<vmem>>, vector<1x8x1xf32>
    %128 = vector.shape_cast %127 : vector<1x8x1xf32> to vector<8x1xf32>
    %129 = vector.broadcast %128 : vector<8x1xf32> to vector<8x256xf32>
    %130 = arith.addf %126, %129 : vector<8x256xf32>
    %cst_76 = arith.constant 5.000000e-01 : f32
    %131 = vector.broadcast %cst_76 : f32 to vector<8x256xf32>
    %132 = arith.mulf %131, %130 : vector<8x256xf32>
    %cst_77 = arith.constant 0.707106769 : f32
    %133 = vector.broadcast %cst_77 : f32 to vector<8x256xf32>
    %134 = arith.mulf %130, %133 : vector<8x256xf32>
    %135 = math.erf %134 : vector<8x256xf32>
    %cst_78 = arith.constant 1.000000e+00 : f32
    %136 = vector.broadcast %cst_78 : f32 to vector<8x256xf32>
    %137 = arith.addf %136, %135 : vector<8x256xf32>
    %138 = arith.mulf %132, %137 : vector<8x256xf32>
    %c1_79 = arith.constant 1 : index
    %c0_80 = arith.constant 0 : index
    %c0_81 = arith.constant 0 : index
    %139 = vector.load %arg5[%c1_79, %c0_80, %c0_81] : memref<2x8x256xf32, #tpu.memory_space<vmem>>, vector<1x8x256xf32>
    %140 = vector.shape_cast %139 : vector<1x8x256xf32> to vector<8x256xf32>
    %141 = vector.shape_cast %138 : vector<8x256xf32> to vector<1x8x256xf32>
    tpu.vector_store %arg5[%c1_79, %c0_80, %c0_81], %141 {strides = array<i32>} : memref<2x8x256xf32, #tpu.memory_space<vmem>>, vector<1x8x256xf32>,
    return
  }
  func.func @transform_0(%arg0: i32) -> (i32, i32, i32) {
    %c0_i32 = arith.constant 0 : i32
    %c0_i32_0 = arith.constant 0 : i32
    %c0_i32_1 = arith.constant 0 : i32
    return %arg0, %c0_i32, %c0_i32_0 : i32, i32, i32
  }
  func.func @transform_1(%arg0: i32) -> (i32, i32) {
    %c0_i32 = arith.constant 0 : i32
    %c0_i32_0 = arith.constant 0 : i32
    %c0_i32_1 = arith.constant 0 : i32
    return %c0_i32, %c0_i32_0 : i32, i32
  }
  func.func @transform_2(%arg0: i32) -> (i32, i32) {
    %c0_i32 = arith.constant 0 : i32
    %c0_i32_0 = arith.constant 0 : i32
    %c0_i32_1 = arith.constant 0 : i32
    return %c0_i32, %c0_i32_0 : i32, i32
  }
  func.func @transform_3(%arg0: i32) -> (i32, i32, i32) {
    %c0_i32 = arith.constant 0 : i32
    %c0_i32_0 = arith.constant 0 : i32
    %c0_i32_1 = arith.constant 0 : i32
    return %arg0, %c0_i32, %c0_i32_0 : i32, i32, i32
  }
  func.func @transform_4(%arg0: i32) -> (i32, i32, i32) {
    %c0_i32 = arith.constant 0 : i32
    %c0_i32_0 = arith.constant 0 : i32
    %c0_i32_1 = arith.constant 0 : i32
    return %arg0, %c0_i32, %c0_i32_0 : i32, i32, i32
  }
}

</mosaic_0001>

<llo_original>
// kernel: tpu_custom_call.1
$region0: #{tpu_custom_call.1}
  #allocation0 [shape = 'u32[]', space=smem, size = 0x4, offset = 0x4, fixed_abs, tag = 'smem constant byte address 0x4 - core index']
  #allocation1 [shape = 'u32[144,128]{1,0:T(1,128)}', space=vmem, size = 0x12000, scoped, tag = 'internal scratch']
  #allocation2 [shape = 'f32[72,512]{1,0:T(8,128)}', space=vmem, size = 0x24000, scoped, tag = 'scratch operand']
  %s0 = inlined_call_operand.hbm [shape: f32[2,8,384], index: 0, kind: input, shape index: {}]
  %s1 = inlined_call_operand.vmem [shape: f32[8,72], index: 1, kind: input, shape index: {}]
  %s2 = inlined_call_operand.vmem [shape: f32[8,2], index: 2, kind: input, shape index: {}]
  %s3 = inlined_call_operand.vmem [shape: f32[2,8,2], index: 3, kind: input, shape index: {}]
  %s4 = inlined_call_operand.hbm [shape: f32[2,8,256], index: 4, kind: output, shape index: {}]
  %s5 = sld [smem:[#allocation0]]
  $region30: #{tpu_custom_call.1} parent=0
    _
  %s7 = ssub.s32 1, %s5
  %s8 = scalar_select 0, %s7, %s5
  $region1: #{tpu_custom_call.1} parent=0
    #allocation3 [shape = 'u8[24576]{0}', space=vmem, size = 0x6000, scoped, tag = 'input window, operand 0, single buffered']
    #allocation4 [shape = 's32[1]{0}', space=sflag, size = 0x4, scoped, tag = 'scoped memory for tpu_custom_call.1']
    #allocation5 [shape = 's32[1]{0}', space=sflag, size = 0x4, scoped, tag = 'scoped memory for tpu_custom_call.1']
    #allocation6 [shape = 'u8[16384]{0}', space=vmem, size = 0x4000, scoped, tag = 'output window, operand 0, single buffered']
    %9 = vsyncpa [#allocation4], 0
    %10 = vsyncpa [#allocation5], 0
    // Predicated region
    $region2: #{tpu_custom_call.1} parent=1 // pred_check
      _
    $region3: #{tpu_custom_call.1} parent=1 // pred_check_branch
      %12 = sbr.rel (0) target = $region5
    $region4: #{tpu_custom_call.1} parent=1 // pred_region
      %s14 = ssub.s32 768, 768
      %15 = vsyncadd [#allocation4], %s14
      %s16 = sshll.u32 [#allocation3], 4
      %s17 = int_to_ptr.vmem [resolvable:$true] %s16
      %22 = dma.hbm_to_vmem [thread:$0]  %s0, 768, %s17, [#allocation4], 384, 384, 24
    $region5: #{tpu_custom_call.1} parent=1 // pred_fallthru
      _
    // Predicated region
    $region6: #{tpu_custom_call.1} parent=1 // pred_check
      _
    $region7: #{tpu_custom_call.1} parent=1 // pred_check_branch
      %24 = sbr.rel (0) target = $region9
    $region8: #{tpu_custom_call.1} parent=1 // pred_region
      _
    $region9: #{tpu_custom_call.1} parent=1 // pred_fallthru
      _
    // Predicated region
    $region10: #{tpu_custom_call.1} parent=1 // pred_check
      _
    $region11: #{tpu_custom_call.1} parent=1 // pred_check_branch
      %26 = sbr.rel (0) target = $region13
    $region12: #{tpu_custom_call.1} parent=1 // pred_region
      _
    $region13: #{tpu_custom_call.1} parent=1 // pred_fallthru
      _
    // Predicated region
    $region14: #{tpu_custom_call.1} parent=1 // pred_check
      _
    $region15: #{tpu_custom_call.1} parent=1 // pred_check_branch
      %28 = sbr.rel (0) target = $region17
    $region16: #{tpu_custom_call.1} parent=1 // pred_region
      _
    $region17: #{tpu_custom_call.1} parent=1 // pred_fallthru
      _
    // Predicated region
    $region18: #{tpu_custom_call.1} parent=1 // pred_check
      _
    $region19: #{tpu_custom_call.1} parent=1 // pred_check_branch
      %30 = sbr.rel (0) target = $region21
    $region20: #{tpu_custom_call.1} parent=1 // pred_region
      %31 = dma.done [#allocation4], 768
    $region21: #{tpu_custom_call.1} parent=1 // pred_fallthru
      _
    %v32 = vlaneseq
    %v33 = vand.u32 %v32, 127
    %v34 = vadd.s32 %v33, 128
    %vm35 = vcmp.lt.s32.totalorder %v33, 0
    %v36 = vsub.s32 0, %v33
    %v37 = vsel %vm35, %v36, %v33
    %v38 = vshrl.u32 %v37, 4
    %v39 = vand.u32 %v37, 15
    %v40 = vsub.s32 0, %v39
    %v41 = vsel %vm35, %v40, %v39
    %vm42 = vcmp.lt.s32.totalorder %v34, 0
    %v43 = vsub.s32 0, %v34
    %v44 = vsel %vm42, %v43, %v34
    %v45 = vshrl.u32 %v44, 4
    %v46 = vand.u32 %v44, 15
    %v47 = vsub.s32 0, %v46
    %v48 = vsel %vm42, %v47, %v46
    %vm49 = vcmp.ne.s32.totalorder %v41, 0
    %vm50 = vcmp.ne.s32.totalorder %v48, 0
    %vm51 = vcmp.lt.s32.totalorder %v41, 0
    %vm52 = vcmp.lt.s32.totalorder %v48, 0
    %vm53 = vmand %vm51, %vm49
    %vm54 = vmand %vm52, %vm50
    %v55 = vadd.s32 %v41, 16
    %v56 = vadd.s32 %v48, 16
    %v57 = vsel %vm53, %v55, %v41
    %v58 = vsel %vm54, %v56, %v48
    %vm59 = vcmp.ne.s32.totalorder %v57, 0
    %vm60 = vcmp.ne.s32.totalorder %v58, 0
    %v61 = vsel %vm59, 1, 0
    %v62 = vsel %vm60, 1, 0
    %v63 = vcvt.s32.f32 %v61
    %v64 = vcvt.s32.f32 %v62
    %vm65 = vcmp.ne.s32.totalorder %v57, 15
    %vm66 = vcmp.ne.s32.totalorder %v58, 15
    %v67 = vsel %vm65, 1, 0
    %v68 = vsel %vm66, 1, 0
    %v69 = vcvt.s32.f32 %v67
    %v70 = vcvt.s32.f32 %v68
    %v71 = vld [vmem:[#allocation3] sm:$0xff]
    %v72 = vld [vmem:[#allocation3 + $0x8] sm:$0xff]
    %v73 = vld [vmem:[#allocation3 + $0x10] sm:$0xff]
    %77 = vrot.lane.b32.xlu0 %v71, 127
    %v78 = vpop.permute.xlu0 %77
    %79 = vrot.lane.b32.xlu0 %v72, 127
    %v80 = vpop.permute.xlu0 %79
    %81 = vrot.lane.b32.xlu0 %v73, 127
    %v82 = vpop.permute.xlu0 %81
    %vm83 = vcmask 1039360
    %v84 = vsel %vm83, %v78, %v80
    %v85 = vsel %vm83, %v80, %v82
    %88 = vrot.lane.b32.xlu0 %v84, 1
    %v89 = vpop.permute.xlu0 %88
    %90 = vrot.lane.b32.xlu0 %v85, 1
    %v91 = vpop.permute.xlu0 %90
    %vm92 = vcmp.lt.s32.totalorder %v33, 1
    %v93 = vsel %vm92, %v89, %v91
    %v94 = vsel %vm92, %v91, %v89
    %v95 = vmul.f32 %v94, %v63
    %v96 = vmul.f32 %v93, %v64
    %97 = vrot.lane.b32.xlu0 %v84, 127
    %v98 = vpop.permute.xlu0 %97
    %99 = vrot.lane.b32.xlu0 %v85, 127
    %v100 = vpop.permute.xlu0 %99
    %vm101 = vcmp.lt.s32.totalorder %v33, 127
    %v102 = vsel %vm101, %v98, %v100
    %v103 = vsel %vm101, %v100, %v98
    %v104 = vmul.f32 %v102, %v69
    %v105 = vmul.f32 %v103, %v70
    %106 = vst [vmem:[#allocation2] sm:$0xff] %v95
    %107 = vst [vmem:[#allocation2 + $0x8] sm:$0xff] %v96
    %108 = vst [vmem:[#allocation2 + $0x20] sm:$0xff] %v84
    %109 = vst [vmem:[#allocation2 + $0x28] sm:$0xff] %v85
    %110 = vst [vmem:[#allocation2 + $0x40] sm:$0xff] %v104
    %111 = vst [vmem:[#allocation2 + $0x48] sm:$0xff] %v105
    %112 = vrot.lane.b32.xlu0 %v71, 111
    %v113 = vpop.permute.xlu0 %112
    %114 = vrot.lane.b32.xlu0 %v72, 111
    %v115 = vpop.permute.xlu0 %114
    %116 = vrot.lane.b32.xlu0 %v73, 111
    %v117 = vpop.permute.xlu0 %116
    %vm118 = vcmask 908288
    %v119 = vsel %vm118, %v113, %v115
    %v120 = vsel %vm118, %v115, %v117
    %123 = vrot.lane.b32.xlu0 %v119, 1
    %v124 = vpop.permute.xlu0 %123
    %125 = vrot.lane.b32.xlu0 %v120, 1
    %v126 = vpop.permute.xlu0 %125
    %v127 = vsel %vm92, %v124, %v126
    %v128 = vsel %vm92, %v126, %v124
    %v129 = vmul.f32 %v128, %v63
    %v130 = vmul.f32 %v127, %v64
    %131 = vrot.lane.b32.xlu0 %v119, 127
    %v132 = vpop.permute.xlu0 %131
    %133 = vrot.lane.b32.xlu0 %v120, 127
    %v134 = vpop.permute.xlu0 %133
    %v135 = vsel %vm101, %v132, %v134
    %v136 = vsel %vm101, %v134, %v132
    %v137 = vmul.f32 %v135, %v69
    %v138 = vmul.f32 %v136, %v70
    %139 = vst [vmem:[#allocation2 + $0x60] sm:$0xff] %v129
    %140 = vst [vmem:[#allocation2 + $0x68] sm:$0xff] %v130
    %141 = vst [vmem:[#allocation2 + $0x80] sm:$0xff] %v119
    %142 = vst [vmem:[#allocation2 + $0x88] sm:$0xff] %v120
    %143 = vst [vmem:[#allocation2 + $0xa0] sm:$0xff] %v137
    %144 = vst [vmem:[#allocation2 + $0xa8] sm:$0xff] %v138
    %145 = vrot.lane.b32.xlu0 %v71, 95
    %v146 = vpop.permute.xlu0 %145
    %147 = vrot.lane.b32.xlu0 %v72, 95
    %v148 = vpop.permute.xlu0 %147
    %149 = vrot.lane.b32.xlu0 %v73, 95
    %v150 = vpop.permute.xlu0 %149
    %vm151 = vcmask 777216
    %v152 = vsel %vm151, %v146, %v148
    %v153 = vsel %vm151, %v148, %v150
    %156 = vrot.lane.b32.xlu0 %v152, 1
    %v157 = vpop.permute.xlu0 %156
    %158 = vrot.lane.b32.xlu0 %v153, 1
    %v159 = vpop.permute.xlu0 %158
    %v160 = vsel %vm92, %v157, %v159
    %v161 = vsel %vm92, %v159, %v157
    %v162 = vmul.f32 %v161, %v63
    %v163 = vmul.f32 %v160, %v64
    %164 = vrot.lane.b32.xlu0 %v152, 127
    %v165 = vpop.permute.xlu0 %164
    %166 = vrot.lane.b32.xlu0 %v153, 127
    %v167 = vpop.permute.xlu0 %166
    %v168 = vsel %vm101, %v165, %v167
    %v169 = vsel %vm101, %v167, %v165
    %v170 = vmul.f32 %v168, %v69
    %v171 = vmul.f32 %v169, %v70
    %172 = vst [vmem:[#allocation2 + $0xc0] sm:$0xff] %v162
    %173 = vst [vmem:[#allocation2 + $0xc8] sm:$0xff] %v163
    %174 = vst [vmem:[#allocation2 + $0xe0] sm:$0xff] %v152
    %175 = vst [vmem:[#allocation2 + $0xe8] sm:$0xff] %v153
    %176 = vst [vmem:[#allocation2 + $0x100] sm:$0xff] %v170
    %177 = vst [vmem:[#allocation2 + $0x108] sm:$0xff] %v171
    %s178 = scalar_lea.vmem [#allocation3], 24
    %v179 = vld [vmem:[%s178] sm:$0xff]
    %v180 = vld [vmem:[%s178 + $0x8] sm:$0xff]
    %v181 = vld [vmem:[%s178 + $0x10] sm:$0xff]
    %185 = vrot.lane.b32.xlu0 %v179, 127
    %v186 = vpop.permute.xlu0 %185
    %187 = vrot.lane.b32.xlu0 %v180, 127
    %v188 = vpop.permute.xlu0 %187
    %189 = vrot.lane.b32.xlu0 %v181, 127
    %v190 = vpop.permute.xlu0 %189
    %v191 = vsel %vm83, %v186, %v188
    %v192 = vsel %vm83, %v188, %v190
    %195 = vrot.lane.b32.xlu0 %v191, 1
    %v196 = vpop.permute.xlu0 %195
    %197 = vrot.lane.b32.xlu0 %v192, 1
    %v198 = vpop.permute.xlu0 %197
    %v199 = vsel %vm92, %v196, %v198
    %v200 = vsel %vm92, %v198, %v196
    %v201 = vmul.f32 %v200, %v63
    %v202 = vmul.f32 %v199, %v64
    %203 = vrot.lane.b32.xlu0 %v191, 127
    %v204 = vpop.permute.xlu0 %203
    %205 = vrot.lane.b32.xlu0 %v192, 127
    %v206 = vpop.permute.xlu0 %205
    %v207 = vsel %vm101, %v204, %v206
    %v208 = vsel %vm101, %v206, %v204
    %v209 = vmul.f32 %v207, %v69
    %v210 = vmul.f32 %v208, %v70
    %211 = vst [vmem:[#allocation2 + $0x10] sm:$0xff] %v201
    %212 = vst [vmem:[#allocation2 + $0x18] sm:$0xff] %v202
    %213 = vst [vmem:[#allocation2 + $0x30] sm:$0xff] %v191
    %214 = vst [vmem:[#allocation2 + $0x38] sm:$0xff] %v192
    %215 = vst [vmem:[#allocation2 + $0x50] sm:$0xff] %v209
    %216 = vst [vmem:[#allocation2 + $0x58] sm:$0xff] %v210
    %217 = vrot.lane.b32.xlu0 %v179, 111
    %v218 = vpop.permute.xlu0 %217
    %219 = vrot.lane.b32.xlu0 %v180, 111
    %v220 = vpop.permute.xlu0 %219
    %221 = vrot.lane.b32.xlu0 %v181, 111
    %v222 = vpop.permute.xlu0 %221
    %v223 = vsel %vm118, %v218, %v220
    %v224 = vsel %vm118, %v220, %v222
    %227 = vrot.lane.b32.xlu0 %v223, 1
    %v228 = vpop.permute.xlu0 %227
    %229 = vrot.lane.b32.xlu0 %v224, 1
    %v230 = vpop.permute.xlu0 %229
    %v231 = vsel %vm92, %v228, %v230
    %v232 = vsel %vm92, %v230, %v228
    %v233 = vmul.f32 %v232, %v63
    %v234 = vmul.f32 %v231, %v64
    %235 = vrot.lane.b32.xlu0 %v223, 127
    %v236 = vpop.permute.xlu0 %235
    %237 = vrot.lane.b32.xlu0 %v224, 127
    %v238 = vpop.permute.xlu0 %237
    %v239 = vsel %vm101, %v236, %v238
    %v240 = vsel %vm101, %v238, %v236
    %v241 = vmul.f32 %v239, %v69
    %v242 = vmul.f32 %v240, %v70
    %243 = vst [vmem:[#allocation2 + $0x70] sm:$0xff] %v233
    %244 = vst [vmem:[#allocation2 + $0x78] sm:$0xff] %v234
    %245 = vst [vmem:[#allocation2 + $0x90] sm:$0xff] %v223
    %246 = vst [vmem:[#allocation2 + $0x98] sm:$0xff] %v224
    %247 = vst [vmem:[#allocation2 + $0xb0] sm:$0xff] %v241
    %248 = vst [vmem:[#allocation2 + $0xb8] sm:$0xff] %v242
    %249 = vrot.lane.b32.xlu0 %v179, 95
    %v250 = vpop.permute.xlu0 %249
    %251 = vrot.lane.b32.xlu0 %v180, 95
    %v252 = vpop.permute.xlu0 %251
    %253 = vrot.lane.b32.xlu0 %v181, 95
    %v254 = vpop.permute.xlu0 %253
    %v255 = vsel %vm151, %v250, %v252
    %v256 = vsel %vm151, %v252, %v254
    %259 = vrot.lane.b32.xlu0 %v255, 1
    %v260 = vpop.permute.xlu0 %259
    %261 = vrot.lane.b32.xlu0 %v256, 1
    %v262 = vpop.permute.xlu0 %261
    %v263 = vsel %vm92, %v260, %v262
    %v264 = vsel %vm92, %v262, %v260
    %v265 = vmul.f32 %v264, %v63
    %v266 = vmul.f32 %v263, %v64
    %267 = vrot.lane.b32.xlu0 %v255, 127
    %v268 = vpop.permute.xlu0 %267
    %269 = vrot.lane.b32.xlu0 %v256, 127
    %v270 = vpop.permute.xlu0 %269
    %v271 = vsel %vm101, %v268, %v270
    %v272 = vsel %vm101, %v270, %v268
    %v273 = vmul.f32 %v271, %v69
    %v274 = vmul.f32 %v272, %v70
    %275 = vst [vmem:[#allocation2 + $0xd0] sm:$0xff] %v265
    %276 = vst [vmem:[#allocation2 + $0xd8] sm:$0xff] %v266
    %277 = vst [vmem:[#allocation2 + $0xf0] sm:$0xff] %v255
    %278 = vst [vmem:[#allocation2 + $0xf8] sm:$0xff] %v256
    %279 = vst [vmem:[#allocation2 + $0x110] sm:$0xff] %v273
    %280 = vst [vmem:[#allocation2 + $0x118] sm:$0xff] %v274
    %v281 = vld [vmem:[%s1] sm:$0xff]
    %v282 = vld [vmem:[#allocation2] sm:$0xff]
    %v283 = vld [vmem:[#allocation2 + $0x8] sm:$0xff]
    %v284 = vld [vmem:[#allocation2 + $0x10] sm:$0xff]
    %v285 = vld [vmem:[#allocation2 + $0x18] sm:$0xff]
    %v286 = vld [vmem:[#allocation2 + $0x20] sm:$0xff]
    %v287 = vld [vmem:[#allocation2 + $0x28] sm:$0xff]
    %v288 = vld [vmem:[#allocation2 + $0x30] sm:$0xff]
    %v289 = vld [vmem:[#allocation2 + $0x38] sm:$0xff]
    %v290 = vld [vmem:[#allocation2 + $0x40] sm:$0xff]
    %v291 = vld [vmem:[#allocation2 + $0x48] sm:$0xff]
    %v292 = vld [vmem:[#allocation2 + $0x50] sm:$0xff]
    %v293 = vld [vmem:[#allocation2 + $0x58] sm:$0xff]
    %v294 = vld [vmem:[#allocation2 + $0x60] sm:$0xff]
    %v295 = vld [vmem:[#allocation2 + $0x68] sm:$0xff]
    %v296 = vld [vmem:[#allocation2 + $0x70] sm:$0xff]
    %v297 = vld [vmem:[#allocation2 + $0x78] sm:$0xff]
    %v298 = vld [vmem:[#allocation2 + $0x80] sm:$0xff]
    %v299 = vld [vmem:[#allocation2 + $0x88] sm:$0xff]
    %v300 = vld [vmem:[#allocation2 + $0x90] sm:$0xff]
    %v301 = vld [vmem:[#allocation2 + $0x98] sm:$0xff]
    %v302 = vld [vmem:[#allocation2 + $0xa0] sm:$0xff]
    %v303 = vld [vmem:[#allocation2 + $0xa8] sm:$0xff]
    %v304 = vld [vmem:[#allocation2 + $0xb0] sm:$0xff]
    %v305 = vld [vmem:[#allocation2 + $0xb8] sm:$0xff]
    %v306 = vld [vmem:[#allocation2 + $0xc0] sm:$0xff]
    %v307 = vld [vmem:[#allocation2 + $0xc8] sm:$0xff]
    %v308 = vld [vmem:[#allocation2 + $0xd0] sm:$0xff]
    %v309 = vld [vmem:[#allocation2 + $0xd8] sm:$0xff]
    %v310 = vld [vmem:[#allocation2 + $0xe0] sm:$0xff]
    %v311 = vld [vmem:[#allocation2 + $0xe8] sm:$0xff]
    %v312 = vld [vmem:[#allocation2 + $0xf0] sm:$0xff]
    %v313 = vld [vmem:[#allocation2 + $0xf8] sm:$0xff]
    %v314 = vld [vmem:[#allocation2 + $0x100] sm:$0xff]
    %v315 = vld [vmem:[#allocation2 + $0x108] sm:$0xff]
    %v316 = vld [vmem:[#allocation2 + $0x110] sm:$0xff]
    %v317 = vld [vmem:[#allocation2 + $0x118] sm:$0xff]
    %v318 = vld [vmem:[%s2] sm:$0xff]
    %320 = vset.pattern.permute.xlu0 0
    %321 = vperm.xlu0 %320, %v318
    %v322 = vpop.permute.xlu0 %321
    %vm324 = vcmask 588800
    %v326 = vsel %vm324, %v281, 0
    %328 = vmatprep.subr.mxu0 0.0
    %329 = vmatpush1.msra.mxu0 0.0
    %330 = vmatprep.subr.mxu0 0.0
    %331 = vmatpush1.msra.mxu0 0.0
    %332 = vmatprep.subr.mxu0 0.0
    %333 = vmatpush1.msra.mxu0 0.0
    %334 = vmatprep.subr.mxu0 0.0
    %335 = vmatpush1.msra.mxu0 0.0
    %336 = vmatprep.subr.mxu0 0.0
    %337 = vmatpush1.msra.mxu0 0.0
    %338 = vmatprep.subr.mxu0 0.0
    %339 = vmatpush1.msra.mxu0 0.0
    %340 = vmatprep.subr.mxu0 0.0
    %341 = vmatpush1.msra.mxu0 0.0
    %342 = vmatprep.subr.mxu0 %v315
    %343 = vmatpush1.msra.mxu0 %v314
    %344 = vmatprep.subr.mxu0 %v311
    %345 = vmatpush1.msra.mxu0 %v310
    %346 = vmatprep.subr.mxu0 %v307
    %347 = vmatpush1.msra.mxu0 %v306
    %348 = vmatprep.subr.mxu0 %v303
    %349 = vmatpush1.msra.mxu0 %v302
    %350 = vmatprep.subr.mxu0 %v299
    %351 = vmatpush1.msra.mxu0 %v298
    %352 = vmatprep.subr.mxu0 %v295
    %353 = vmatpush1.msra.mxu0 %v294
    %354 = vmatprep.subr.mxu0 %v291
    %355 = vmatpush1.msra.mxu0 %v290
    %356 = vmatprep.subr.mxu0 %v287
    %357 = vmatpush1.msra.mxu0 %v286
    %358 = vmatprep.subr.mxu0 %v283
    %359 = vmatpush1.msra.mxu0 %v282
    %360 = vmatprep.subr.mxu0 0.0
    %361 = vmatpush2.msra.mxu0 0.0
    %362 = vmatprep.subr.mxu0 0.0
    %363 = vmatpush2.msra.mxu0 0.0
    %364 = vmatprep.subr.mxu0 0.0
    %365 = vmatpush2.msra.mxu0 0.0
    %366 = vmatprep.subr.mxu0 0.0
    %367 = vmatpush2.msra.mxu0 0.0
    %368 = vmatprep.subr.mxu0 0.0
    %369 = vmatpush2.msra.mxu0 0.0
    %370 = vmatprep.subr.mxu0 0.0
    %371 = vmatpush2.msra.mxu0 0.0
    %372 = vmatprep.subr.mxu0 0.0
    %373 = vmatpush2.msra.mxu0 0.0
    %374 = vmatprep.subr.mxu0 0.0
    %375 = vmatpush2.msra.mxu0 0.0
    %376 = vmatprep.subr.mxu0 0.0
    %377 = vmatpush2.msra.mxu0 0.0
    %378 = vmatprep.subr.mxu0 0.0
    %379 = vmatpush2.msra.mxu0 0.0
    %380 = vmatprep.subr.mxu0 0.0
    %381 = vmatpush2.msra.mxu0 0.0
    %382 = vmatprep.subr.mxu0 0.0
    %383 = vmatpush2.msra.mxu0 0.0
    %384 = vmatprep.subr.mxu0 0.0
    %385 = vmatpush2.msra.mxu0 0.0
    %386 = vmatprep.subr.mxu0 0.0
    %387 = vmatpush2.msra.mxu0 0.0
    %388 = vmatprep.subr.mxu0 0.0
    %389 = vmatpush2.msra.mxu0 0.0
    %390 = vmatprep.subr.mxu0 0.0
    %391 = vmatpush2.msra.mxu0 0.0
    %392 = vmatprep.mubr.f32.mxu0 0.0
    %393 = vmatmul.mubr.f32.gmra.mxu0 %v326
    %v394 = vpop.f32.mrf.mxu0
    %v395 = vadd.f32 %v322, %v394
    %v396 = vpop.f32.mrf.mxu0
    %v397 = vadd.f32 %v322, %v396
    %398 = vdwg.mxu0
    %399 = vmatprep.subr.mxu0 0.0
    %400 = vmatpush1.msra.mxu0 0.0
    %401 = vmatprep.subr.mxu0 0.0
    %402 = vmatpush1.msra.mxu0 0.0
    %403 = vmatprep.subr.mxu0 0.0
    %404 = vmatpush1.msra.mxu0 0.0
    %405 = vmatprep.subr.mxu0 0.0
    %406 = vmatpush1.msra.mxu0 0.0
    %407 = vmatprep.subr.mxu0 0.0
    %408 = vmatpush1.msra.mxu0 0.0
    %409 = vmatprep.subr.mxu0 0.0
    %410 = vmatpush1.msra.mxu0 0.0
    %411 = vmatprep.subr.mxu0 0.0
    %412 = vmatpush1.msra.mxu0 0.0
    %413 = vmatprep.subr.mxu0 %v317
    %414 = vmatpush1.msra.mxu0 %v316
    %415 = vmatprep.subr.mxu0 %v313
    %416 = vmatpush1.msra.mxu0 %v312
    %417 = vmatprep.subr.mxu0 %v309
    %418 = vmatpush1.msra.mxu0 %v308
    %419 = vmatprep.subr.mxu0 %v305
    %420 = vmatpush1.msra.mxu0 %v304
    %421 = vmatprep.subr.mxu0 %v301
    %422 = vmatpush1.msra.mxu0 %v300
    %423 = vmatprep.subr.mxu0 %v297
    %424 = vmatpush1.msra.mxu0 %v296
    %425 = vmatprep.subr.mxu0 %v293
    %426 = vmatpush1.msra.mxu0 %v292
    %427 = vmatprep.subr.mxu0 %v289
    %428 = vmatpush1.msra.mxu0 %v288
    %429 = vmatprep.subr.mxu0 %v285
    %430 = vmatpush1.msra.mxu0 %v284
    %431 = vmatprep.subr.mxu0 0.0
    %432 = vmatpush2.msra.mxu0 0.0
    %433 = vmatprep.subr.mxu0 0.0
    %434 = vmatpush2.msra.mxu0 0.0
    %435 = vmatprep.subr.mxu0 0.0
    %436 = vmatpush2.msra.mxu0 0.0
    %437 = vmatprep.subr.mxu0 0.0
    %438 = vmatpush2.msra.mxu0 0.0
    %439 = vmatprep.subr.mxu0 0.0
    %440 = vmatpush2.msra.mxu0 0.0
    %441 = vmatprep.subr.mxu0 0.0
    %442 = vmatpush2.msra.mxu0 0.0
    %443 = vmatprep.subr.mxu0 0.0
    %444 = vmatpush2.msra.mxu0 0.0
    %445 = vmatprep.subr.mxu0 0.0
    %446 = vmatpush2.msra.mxu0 0.0
    %447 = vmatprep.subr.mxu0 0.0
    %448 = vmatpush2.msra.mxu0 0.0
    %449 = vmatprep.subr.mxu0 0.0
    %450 = vmatpush2.msra.mxu0 0.0
    %451 = vmatprep.subr.mxu0 0.0
    %452 = vmatpush2.msra.mxu0 0.0
    %453 = vmatprep.subr.mxu0 0.0
    %454 = vmatpush2.msra.mxu0 0.0
    %455 = vmatprep.subr.mxu0 0.0
    %456 = vmatpush2.msra.mxu0 0.0
    %457 = vmatprep.subr.mxu0 0.0
    %458 = vmatpush2.msra.mxu0 0.0
    %459 = vmatprep.subr.mxu0 0.0
    %460 = vmatpush2.msra.mxu0 0.0
    %461 = vmatprep.subr.mxu0 0.0
    %462 = vmatpush2.msra.mxu0 0.0
    %463 = vmatprep.mubr.f32.mxu0 0.0
    %464 = vmatmul.mubr.f32.gmra.mxu0 %v326
    %v465 = vpop.f32.mrf.mxu0
    %v466 = vadd.f32 %v322, %v465
    %v467 = vpop.f32.mrf.mxu0
    %v468 = vadd.f32 %v322, %v467
    %469 = vdwg.mxu0
    %v470 = vmul.f32 %v395, %v395
    %v471 = vmul.f32 %v397, %v397
    %v472 = vmul.f32 %v466, %v466
    %v473 = vmul.f32 %v468, %v468
    %v474 = vrot.slane %v470, 4
    %v475 = vadd.f32 %v470, %v474
    %v476 = vrot.slane %v475, 2
    %v477 = vadd.f32 %v475, %v476
    %v478 = vrot.slane %v477, 1
    %v479 = vadd.f32 %v477, %v478
    %v480 = vrot.slane %v471, 4
    %v481 = vadd.f32 %v471, %v480
    %v482 = vrot.slane %v481, 2
    %v483 = vadd.f32 %v481, %v482
    %v484 = vrot.slane %v483, 1
    %v485 = vadd.f32 %v483, %v484
    %v486 = vrot.slane %v472, 4
    %v487 = vadd.f32 %v472, %v486
    %v488 = vrot.slane %v487, 2
    %v489 = vadd.f32 %v487, %v488
    %v490 = vrot.slane %v489, 1
    %v491 = vadd.f32 %v489, %v490
    %v492 = vrot.slane %v473, 4
    %v493 = vadd.f32 %v473, %v492
    %v494 = vrot.slane %v493, 2
    %v495 = vadd.f32 %v493, %v494
    %v496 = vrot.slane %v495, 1
    %v497 = vadd.f32 %v495, %v496
    %v498 = vmax.f32 %v479, 1e-24
    %v499 = vmax.f32 %v485, 1e-24
    %v500 = vmax.f32 %v491, 1e-24
    %v501 = vmax.f32 %v497, 1e-24
    %v502 = vrsqrt.pop %v498
    %v503 = vrsqrt.pop %v499
    %v504 = vrsqrt.pop %v500
    %v505 = vrsqrt.pop %v501
    %v506 = vmul.f32 %v395, %v502
    %v507 = vmul.f32 %v397, %v503
    %v508 = vmul.f32 %v466, %v504
    %v509 = vmul.f32 %v468, %v505
    %510 = vset.pattern.permute.xlu0 1
    %511 = vperm.xlu0 %510, %v318
    %v512 = vpop.permute.xlu0 %511
    %v514 = vmul.f32 %v506, %v512
    %v515 = vmul.f32 %v507, %v512
    %v516 = vmul.f32 %v508, %v512
    %v517 = vmul.f32 %v509, %v512
    %v518 = vld [vmem:[%s3] sm:$0xff]
    %v519 = vadd.f32 %v518, 1.0
    %521 = vset.pattern.permute.xlu0 0
    %522 = vperm.xlu0 %521, %v519
    %v523 = vpop.permute.xlu0 %522
    %v525 = vmul.f32 %v514, %v523
    %v526 = vmul.f32 %v515, %v523
    %528 = vset.pattern.permute.xlu0 1
    %529 = vperm.xlu0 %528, %v518
    %v530 = vpop.permute.xlu0 %529
    %v532 = vadd.f32 %v525, %v530
    %v533 = vadd.f32 %v526, %v530
    %v534 = vmul.f32 %v532, 0.5
    %v535 = vmul.f32 %v533, 0.5
    %v536 = vmul.f32 %v532, 0.70710677
    %v537 = vmul.f32 %v533, 0.70710677
    %v538 = verf.f32.pop %v536
    %v539 = verf.f32.pop %v537
    %v540 = vadd.f32 %v538, 1.0
    %v541 = vadd.f32 %v539, 1.0
    %v542 = vmul.f32 %v534, %v540
    %v543 = vmul.f32 %v535, %v541
    %544 = vst [vmem:[#allocation6] sm:$0xff] %v542
    %545 = vst [vmem:[#allocation6 + $0x8] sm:$0xff] %v543
    %s546 = scalar_lea.vmem %s3, 8
    %v547 = vld [vmem:[%s546] sm:$0xff]
    %v548 = vadd.f32 %v547, 1.0
    %550 = vset.pattern.permute.xlu0 0
    %551 = vperm.xlu0 %550, %v548
    %v552 = vpop.permute.xlu0 %551
    %v554 = vmul.f32 %v516, %v552
    %v555 = vmul.f32 %v517, %v552
    %557 = vset.pattern.permute.xlu0 1
    %558 = vperm.xlu0 %557, %v547
    %v559 = vpop.permute.xlu0 %558
    %v561 = vadd.f32 %v554, %v559
    %v562 = vadd.f32 %v555, %v559
    %v563 = vmul.f32 %v561, 0.5
    %v564 = vmul.f32 %v562, 0.5
    %v565 = vmul.f32 %v561, 0.70710677
    %v566 = vmul.f32 %v562, 0.70710677
    %v567 = verf.f32.pop %v565
    %v568 = verf.f32.pop %v566
    %v569 = vadd.f32 %v567, 1.0
    %v570 = vadd.f32 %v568, 1.0
    %v571 = vmul.f32 %v563, %v569
    %v572 = vmul.f32 %v564, %v570
    %s573 = scalar_lea.vmem [#allocation6], 16
    %574 = vst [vmem:[%s573] sm:$0xff] %v571
    %575 = vst [vmem:[%s573 + $0x8] sm:$0xff] %v572
    // Predicated region
    $region22: #{tpu_custom_call.1} parent=1 // pred_check
      _
    $region23: #{tpu_custom_call.1} parent=1 // pred_check_branch
      %577 = sbr.rel (0) target = $region25
    $region24: #{tpu_custom_call.1} parent=1 // pred_region
      %s579 = ssub.s32 512, 512
      %580 = vsyncadd [#allocation5], %s579
      %s581 = sshll.u32 [#allocation6], 4
      %s582 = int_to_ptr.vmem [resolvable:$true] %s581
      %587 = dma.vmem_to_hbm [thread:$0]  %s582, 512, %s4, [#allocation5], 256, 256, 16
    $region25: #{tpu_custom_call.1} parent=1 // pred_fallthru
      _
    // Predicated region
    $region26: #{tpu_custom_call.1} parent=1 // pred_check
      _
    $region27: #{tpu_custom_call.1} parent=1 // pred_check_branch
      %589 = sbr.rel (0) target = $region29
    $region28: #{tpu_custom_call.1} parent=1 // pred_region
      %590 = dma.done [#allocation5], 512
    $region29: #{tpu_custom_call.1} parent=1 // pred_fallthru
      _
    %591 = vsyncpa [#allocation4], 1
    %592 = vsyncpa [#allocation5], 1

</llo_original>
